<compile_context>
chip_gen: v5e
topology: v5e:2x2
jax: 0.10.0
libtpu: 0.0.40
codegen_flags: <defaults>
</compile_context>

<pallas_src>
import functools

import jax
import jax.numpy as jnp
from jax.experimental import pallas as pl
from jax.experimental.pallas import tpu as pltpu

EPS = 1e-5
PAD = 128  # lane-dense feature padding (all real widths here are <= 32)


# ------------------------------- Pallas kernel ------------------------------ #

def _fused_ae_kernel(x_ref, w_ref, v_ref, out_ref, *, num_enc, num_dec):
    """Whole autoencoder forward in one kernel invocation (empty grid).

    x_ref:   (N, P)     padded input activations (pad lanes are exactly 0)
    w_ref:   (L, P, P)  padded weights; layer l computes y @ w_ref[l]
    v_ref:   (3, L, P)  rows 0/1/2 = bias / gamma / beta per layer (0 on pad lanes)
    out_ref: (2, N, P)  [0] = encoder bottleneck, [1] = decoder (sigmoid) output
    """
    n = x_ref.shape[0]
    inv_n = 1.0 / n
    num_layers = num_enc + num_dec

    y = x_ref[...]
    # L is tiny (2*(dep-1)); static unroll keeps activations in vregs.
    # TODO(synk): switch to lax.fori_loop + pl.when branches if depth grows large
    #             (static unroll does not bound live ranges for deep stacks).
    for l in range(num_layers):
        w = w_ref[l]                              # (P, P) weight tile
        b = v_ref[0, l:l + 1, :]                  # (1, P) bias row (direct ref slice)
        z = jnp.dot(y, w, preferred_element_type=jnp.float32) + b

        if l == num_layers - 1:
            # Final decoder layer: Linear -> Sigmoid (no ReLU / BN).
            # sigmoid(z) = 0.5 * (tanh(z/2) + 1): single EUP transcendental.
            y = 0.5 * (jnp.tanh(0.5 * z) + 1.0)
        else:
            gamma = v_ref[1, l:l + 1, :]          # (1, P)
            beta = v_ref[2, l:l + 1, :]           # (1, P)
            z = jnp.maximum(z, 0.0)               # ReLU
            # One-pass BatchNorm1d (training-mode biased batch statistics):
            #   mean = E[z], var = E[z^2] - mean^2 (clamped >= 0)
            #   out  = z * (gamma * rsqrt(var+eps)) + (beta - mean * scale)
            mean = jnp.sum(z, axis=0, keepdims=True) * inv_n
            ex2 = jnp.sum(z * z, axis=0, keepdims=True) * inv_n
            var = jnp.maximum(ex2 - mean * mean, 0.0)
            scale = gamma * jax.lax.rsqrt(var + EPS)
            shift = beta - mean * scale
            y = z * scale + shift
            # Pad lanes: gamma = beta = 0 -> output stays exactly 0.

        if l == num_enc - 1:
            out_ref[0, :, :] = y                  # bottleneck activation

    out_ref[1, :, :] = y
    # Pad lanes of out_ref[1] hold sigmoid(0)=0.5; the wrapper slices them off.


def _full_spec(shape):
    # Block == full array, empty grid -> trivially satisfies (8,128) tiling rules.
    return pl.BlockSpec(shape, lambda: (0,) * len(shape))


# --------------------------------- Wrapper ---------------------------------- #

@functools.partial(jax.jit, static_argnames=("num_enc", "num_dec", "layer_dims"))
def ae_forward_padded(x_pad, w_all, v_all, *, num_enc, num_dec, layer_dims):
    n, p = x_pad.shape
    kernel = functools.partial(_fused_ae_kernel, num_enc=num_enc, num_dec=num_dec)

    # CostEstimate based on the REAL (unpadded) work, not the 128-padded tiles.
    flops = int(sum(2 * n * fin * fout for fin, fout in layer_dims))
    transcendentals = int(
        n * layer_dims[-1][1]                       # final-layer sigmoid/tanh
        + sum(fout for _, fout in layer_dims[:-1])  # per-feature rsqrt per BN layer
    )
    bytes_accessed = int(4 * (
        n * layer_dims[0][0]
        + sum(fin * fout + 3 * fout for fin, fout in layer_dims)
        + n * (layer_dims[num_enc - 1][1] + layer_dims[-1][1])
    ))

    out = pl.pallas_call(
        kernel,
        out_shape=jax.ShapeDtypeStruct((2, n, p), jnp.float32),
        in_specs=[
            _full_spec(x_pad.shape),
            _full_spec(w_all.shape),
            _full_spec(v_all.shape),
        ],
        out_specs=_full_spec((2, n, p)),
        cost_estimate=pl.CostEstimate(
            flops=flops, transcendentals=transcendentals, bytes_accessed=bytes_accessed),
        # Explicit VMEM budget: whole working set is < 1 MiB today; keep a cap that
        # is safe on v7x (64 MiB physical) while leaving room to raise N later.
        compiler_params=pltpu.CompilerParams(vmem_limit_bytes=32 * 1024 * 1024),
    )(x_pad, w_all, v_all)
    return out


# --------------------------- Parameter construction ------------------------- #

def init_params(encoder_struct, key):
    """Mirror the PyTorch module init.

    Linear weight: kaiming_normal_ (std = sqrt(2/fan_in)), stored transposed as
    (in, out). Bias: U(-1/sqrt(fan_in), 1/sqrt(fan_in)). BN: gamma=1, beta=0.
    Layer order matches forward(): encoder 0..dep-2, then decoder 0..dep-2
    (last decoder layer has no BN/ReLU; Sigmoid instead).
    """
    dep = len(encoder_struct)
    layer_dims = []
    for i in range(dep - 1):                                    # encoder
        layer_dims.append((int(encoder_struct[i]), int(encoder_struct[i + 1])))
    for i in range(dep - 1):                                    # decoder
        layer_dims.append((int(encoder_struct[dep - 1 - i]), int(encoder_struct[dep - 2 - i])))
    layer_dims = tuple(layer_dims)

    num_layers = len(layer_dims)
    w_all = jnp.zeros((num_layers, PAD, PAD), jnp.float32)
    v_all = jnp.zeros((3, num_layers, PAD), jnp.float32)        # [bias, gamma, beta]
    raw = []
    for l, (fin, fout) in enumerate(layer_dims):
        key, kw, kb = jax.random.split(key, 3)
        w = jax.random.normal(kw, (fin, fout), jnp.float32) * jnp.sqrt(2.0 / fin)
        b = jax.random.uniform(kb, (fout,), jnp.float32,
                               -1.0 / jnp.sqrt(fin), 1.0 / jnp.sqrt(fin))
        gamma = jnp.ones((fout,), jnp.float32)
        beta = jnp.zeros((fout,), jnp.float32)
        w_all = w_all.at[l, :fin, :fout].set(w)
        v_all = v_all.at[0, l, :fout].set(b)
        v_all = v_all.at[1, l, :fout].set(gamma)                # pad lanes keep gamma = 0
        v_all = v_all.at[2, l, :fout].set(beta)
        raw.append((w, b, gamma, beta))
    return w_all, v_all, raw, layer_dims


# ----------------------------- Pure-JAX reference ---------------------------- #

def reference_forward(x, raw, num_enc):
    num_layers = len(raw)
    y = x
    encoded = None
    for l, (w, b, gamma, beta) in enumerate(raw):
        y = y @ w + b
        if l == num_layers - 1:
            y = jax.nn.sigmoid(y)
        else:
            y = jnp.maximum(y, 0.0)
            mean = jnp.mean(y, axis=0, keepdims=True)
            var = jnp.mean((y - mean) ** 2, axis=0, keepdims=True)   # biased, train-mode
            y = (y - mean) * jax.lax.rsqrt(var + EPS) * gamma + beta
        if l == num_enc - 1:
            encoded = y
    return encoded, y


# ----------------------------------- Driver --------------------------------- #

if __name__ == "__main__":
    encoder_struct = (32, 16, 8)          # as in AE_1det_struct(encoder_struct)
    dep = len(encoder_struct)
    num_enc = dep - 1
    num_dec = dep - 1
    # Latency-bound kernel -> amortize launch overhead by batching; 128 samples
    # (sublane-dense) still uses < 1 MiB of VMEM.
    batch = 128

    key = jax.random.PRNGKey(0)
    key, kx = jax.random.split(key)
    x = jax.random.normal(kx, (batch, encoder_struct[0]), jnp.float32)

    w_all, v_all, raw, layer_dims = init_params(encoder_struct, key)

    # Lane-dense padded input (pad lanes are zero; zero weight rows keep them inert).
    x_pad = jnp.zeros((batch, PAD), jnp.float32).at[:, :encoder_struct[0]].set(x)

    out = ae_forward_padded(x_pad, w_all, v_all,
                            num_enc=num_enc, num_dec=num_dec, layer_dims=layer_dims)
    jax.block_until_ready(out)

    encoded = out[0, :, :encoder_struct[-1]]
    decoded = out[1, :, :encoder_struct[0]]

    # Correctness vs. a plain-JAX reference of the PyTorch forward.
    ref_enc, ref_dec = reference_forward(x, raw, num_enc)
    assert encoded.shape == (batch, encoder_struct[-1])
    assert decoded.shape == (batch, encoder_struct[0])
    assert bool(jnp.all(jnp.isfinite(encoded))) and bool(jnp.all(jnp.isfinite(decoded)))
    assert bool(jnp.all(decoded >= 0.0)) and bool(jnp.all(decoded <= 1.0))
    assert bool(jnp.allclose(encoded, ref_enc, rtol=1e-3, atol=1e-3)), "encoder mismatch"
    assert bool(jnp.allclose(decoded, ref_dec, rtol=1e-3, atol=1e-3)), "decoder mismatch"

    print("KERNEL_OK")
</pallas_src>

<mosaic_0001>
module attributes {stable_mosaic.version = 11 : i64} {
  func.func @_fused_ae_kernel(%arg0: memref<128x128xf32, #tpu.memory_space<vmem>>, %arg1: memref<4x128x128xf32, #tpu.memory_space<vmem>>, %arg2: memref<3x4x128xf32, #tpu.memory_space<vmem>>, %arg3: memref<2x128x128xf32, #tpu.memory_space<vmem>>) attributes {dimension_semantics = [], scalar_prefetch = 0 : i64, scratch_operands = 0 : i64, tpu.core_type = #tpu.core_type<tc>} {
    %c0 = arith.constant 0 : index
    %c0_0 = arith.constant 0 : index
    %0 = vector.load %arg0[%c0, %c0_0] : memref<128x128xf32, #tpu.memory_space<vmem>>, vector<128x128xf32>
    %c0_1 = arith.constant 0 : index
    %c0_2 = arith.constant 0 : index
    %c0_3 = arith.constant 0 : index
    %1 = vector.load %arg1[%c0_1, %c0_2, %c0_3] : memref<4x128x128xf32, #tpu.memory_space<vmem>>, vector<1x128x128xf32>
    %2 = vector.shape_cast %1 : vector<1x128x128xf32> to vector<128x128xf32>
    %c0_4 = arith.constant 0 : index
    %c0_5 = arith.constant 0 : index
    %c0_6 = arith.constant 0 : index
    %3 = vector.load %arg2[%c0_4, %c0_5, %c0_6] : memref<3x4x128xf32, #tpu.memory_space<vmem>>, vector<1x1x128xf32>
    %4 = vector.shape_cast %3 : vector<1x1x128xf32> to vector<1x128xf32>
    %cst = arith.constant dense<0.000000e+00> : vector<128x128xf32>
    %5 = tpu.matmul %0, %2, %cst {dimension_numbers = #tpu.dot_dimension_numbers<[1], [0], [0], [1], [0, 0, 1, 1], [], []>} : vector<128x128xf32>, vector<128x128xf32>, vector<128x128xf32> -> vector<128x128xf32>
    %6 = vector.broadcast %4 : vector<1x128xf32> to vector<128x128xf32>
    %7 = arith.addf %5, %6 : vector<128x128xf32>
    %c1 = arith.constant 1 : index
    %c0_7 = arith.constant 0 : index
    %c0_8 = arith.constant 0 : index
    %8 = vector.load %arg2[%c1, %c0_7, %c0_8] : memref<3x4x128xf32, #tpu.memory_space<vmem>>, vector<1x1x128xf32>
    %9 = vector.shape_cast %8 : vector<1x1x128xf32> to vector<1x128xf32>
    %c2 = arith.constant 2 : index
    %c0_9 = arith.constant 0 : index
    %c0_10 = arith.constant 0 : index
    %10 = vector.load %arg2[%c2, %c0_9, %c0_10] : memref<3x4x128xf32, #tpu.memory_space<vmem>>, vector<1x1x128xf32>
    %11 = vector.shape_cast %10 : vector<1x1x128xf32> to vector<1x128xf32>
    %cst_11 = arith.constant 0.000000e+00 : f32
    %12 = vector.broadcast %cst_11 : f32 to vector<128x128xf32>
    %13 = arith.maximumf %7, %12 : vector<128x128xf32>
    %cst_12 = arith.constant dense<0.000000e+00> : vector<128xf32>
    %14 = vector.multi_reduction <add>, %13, %cst_12 [0] : vector<128x128xf32> to vector<128xf32>
    %15 = vector.shape_cast %14 : vector<128xf32> to vector<1x128xf32>
    %cst_13 = arith.constant 7.812500e-03 : f32
    %16 = vector.broadcast %cst_13 : f32 to vector<1x128xf32>
    %17 = arith.mulf %15, %16 : vector<1x128xf32>
    %18 = arith.mulf %13, %13 : vector<128x128xf32>
    %cst_14 = arith.constant dense<0.000000e+00> : vector<128xf32>
    %19 = vector.multi_reduction <add>, %18, %cst_14 [0] : vector<128x128xf32> to vector<128xf32>
    %20 = vector.shape_cast %19 : vector<128xf32> to vector<1x128xf32>
    %cst_15 = arith.constant 7.812500e-03 : f32
    %21 = vector.broadcast %cst_15 : f32 to vector<1x128xf32>
    %22 = arith.mulf %20, %21 : vector<1x128xf32>
    %23 = arith.mulf %17, %17 : vector<1x128xf32>
    %24 = arith.subf %22, %23 : vector<1x128xf32>
    %cst_16 = arith.constant 0.000000e+00 : f32
    %25 = vector.broadcast %cst_16 : f32 to vector<1x128xf32>
    %26 = arith.maximumf %24, %25 : vector<1x128xf32>
    %cst_17 = arith.constant 9.99999974E-6 : f32
    %27 = vector.broadcast %cst_17 : f32 to vector<1x128xf32>
    %28 = arith.addf %26, %27 : vector<1x128xf32>
    %29 = math.rsqrt %28 : vector<1x128xf32>
    %30 = arith.mulf %9, %29 : vector<1x128xf32>
    %31 = arith.mulf %17, %30 : vector<1x128xf32>
    %32 = arith.subf %11, %31 : vector<1x128xf32>
    %33 = vector.broadcast %30 : vector<1x128xf32> to vector<128x128xf32>
    %34 = arith.mulf %13, %33 : vector<128x128xf32>
    %35 = vector.broadcast %32 : vector<1x128xf32> to vector<128x128xf32>
    %36 = arith.addf %34, %35 : vector<128x128xf32>
    %c1_18 = arith.constant 1 : index
    %c0_19 = arith.constant 0 : index
    %c0_20 = arith.constant 0 : index
    %37 = vector.load %arg1[%c1_18, %c0_19, %c0_20] : memref<4x128x128xf32, #tpu.memory_space<vmem>>, vector<1x128x128xf32>
    %38 = vector.shape_cast %37 : vector<1x128x128xf32> to vector<128x128xf32>
    %c0_21 = arith.constant 0 : index
    %c1_22 = arith.constant 1 : index
    %c0_23 = arith.constant 0 : index
    %39 = vector.load %arg2[%c0_21, %c1_22, %c0_23] : memref<3x4x128xf32, #tpu.memory_space<vmem>>, vector<1x1x128xf32>
    %40 = vector.shape_cast %39 : vector<1x1x128xf32> to vector<1x128xf32>
    %cst_24 = arith.constant dense<0.000000e+00> : vector<128x128xf32>
    %41 = tpu.matmul %36, %38, %cst_24 {dimension_numbers = #tpu.dot_dimension_numbers<[1], [0], [0], [1], [0, 0, 1, 1], [], []>} : vector<128x128xf32>, vector<128x128xf32>, vector<128x128xf32> -> vector<128x128xf32>
    %42 = vector.broadcast %40 : vector<1x128xf32> to vector<128x128xf32>
    %43 = arith.addf %41, %42 : vector<128x128xf32>
    %c1_25 = arith.constant 1 : index
    %c1_26 = arith.constant 1 : index
    %c0_27 = arith.constant 0 : index
    %44 = vector.load %arg2[%c1_25, %c1_26, %c0_27] : memref<3x4x128xf32, #tpu.memory_space<vmem>>, vector<1x1x128xf32>
    %45 = vector.shape_cast %44 : vector<1x1x128xf32> to vector<1x128xf32>
    %c2_28 = arith.constant 2 : index
    %c1_29 = arith.constant 1 : index
    %c0_30 = arith.constant 0 : index
    %46 = vector.load %arg2[%c2_28, %c1_29, %c0_30] : memref<3x4x128xf32, #tpu.memory_space<vmem>>, vector<1x1x128xf32>
    %47 = vector.shape_cast %46 : vector<1x1x128xf32> to vector<1x128xf32>
    %cst_31 = arith.constant 0.000000e+00 : f32
    %48 = vector.broadcast %cst_31 : f32 to vector<128x128xf32>
    %49 = arith.maximumf %43, %48 : vector<128x128xf32>
    %cst_32 = arith.constant dense<0.000000e+00> : vector<128xf32>
    %50 = vector.multi_reduction <add>, %49, %cst_32 [0] : vector<128x128xf32> to vector<128xf32>
    %51 = vector.shape_cast %50 : vector<128xf32> to vector<1x128xf32>
    %cst_33 = arith.constant 7.812500e-03 : f32
    %52 = vector.broadcast %cst_33 : f32 to vector<1x128xf32>
    %53 = arith.mulf %51, %52 : vector<1x128xf32>
    %54 = arith.mulf %49, %49 : vector<128x128xf32>
    %cst_34 = arith.constant dense<0.000000e+00> : vector<128xf32>
    %55 = vector.multi_reduction <add>, %54, %cst_34 [0] : vector<128x128xf32> to vector<128xf32>
    %56 = vector.shape_cast %55 : vector<128xf32> to vector<1x128xf32>
    %cst_35 = arith.constant 7.812500e-03 : f32
    %57 = vector.broadcast %cst_35 : f32 to vector<1x128xf32>
    %58 = arith.mulf %56, %57 : vector<1x128xf32>
    %59 = arith.mulf %53, %53 : vector<1x128xf32>
    %60 = arith.subf %58, %59 : vector<1x128xf32>
    %cst_36 = arith.constant 0.000000e+00 : f32
    %61 = vector.broadcast %cst_36 : f32 to vector<1x128xf32>
    %62 = arith.maximumf %60, %61 : vector<1x128xf32>
    %cst_37 = arith.constant 9.99999974E-6 : f32
    %63 = vector.broadcast %cst_37 : f32 to vector<1x128xf32>
    %64 = arith.addf %62, %63 : vector<1x128xf32>
    %65 = math.rsqrt %64 : vector<1x128xf32>
    %66 = arith.mulf %45, %65 : vector<1x128xf32>
    %67 = arith.mulf %53, %66 : vector<1x128xf32>
    %68 = arith.subf %47, %67 : vector<1x128xf32>
    %69 = vector.broadcast %66 : vector<1x128xf32> to vector<128x128xf32>
    %70 = arith.mulf %49, %69 : vector<128x128xf32>
    %71 = vector.broadcast %68 : vector<1x128xf32> to vector<128x128xf32>
    %72 = arith.addf %70, %71 : vector<128x128xf32>
    %c0_38 = arith.constant 0 : index
    %c0_39 = arith.constant 0 : index
    %c0_40 = arith.constant 0 : index
    %73 = vector.load %arg3[%c0_38, %c0_39, %c0_40] : memref<2x128x128xf32, #tpu.memory_space<vmem>>, vector<1x128x128xf32>
    %74 = vector.shape_cast %73 : vector<1x128x128xf32> to vector<128x128xf32>
    %75 = vector.shape_cast %72 : vector<128x128xf32> to vector<1x128x128xf32>
    tpu.vector_store %arg3[%c0_38, %c0_39, %c0_40], %75 {strides = array<i32>} : memref<2x128x128xf32, #tpu.memory_space<vmem>>, vector<1x128x128xf32>,
    %c2_41 = arith.constant 2 : index
    %c0_42 = arith.constant 0 : index
    %c0_43 = arith.constant 0 : index
    %76 = vector.load %arg1[%c2_41, %c0_42, %c0_43] : memref<4x128x128xf32, #tpu.memory_space<vmem>>, vector<1x128x128xf32>
    %77 = vector.shape_cast %76 : vector<1x128x128xf32> to vector<128x128xf32>
    %c0_44 = arith.constant 0 : index
    %c2_45 = arith.constant 2 : index
    %c0_46 = arith.constant 0 : index
    %78 = vector.load %arg2[%c0_44, %c2_45, %c0_46] : memref<3x4x128xf32, #tpu.memory_space<vmem>>, vector<1x1x128xf32>
    %79 = vector.shape_cast %78 : vector<1x1x128xf32> to vector<1x128xf32>
    %cst_47 = arith.constant dense<0.000000e+00> : vector<128x128xf32>
    %80 = tpu.matmul %72, %77, %cst_47 {dimension_numbers = #tpu.dot_dimension_numbers<[1], [0], [0], [1], [0, 0, 1, 1], [], []>} : vector<128x128xf32>, vector<128x128xf32>, vector<128x128xf32> -> vector<128x128xf32>
    %81 = vector.broadcast %79 : vector<1x128xf32> to vector<128x128xf32>
    %82 = arith.addf %80, %81 : vector<128x128xf32>
    %c1_48 = arith.constant 1 : index
    %c2_49 = arith.constant 2 : index
    %c0_50 = arith.constant 0 : index
    %83 = vector.load %arg2[%c1_48, %c2_49, %c0_50] : memref<3x4x128xf32, #tpu.memory_space<vmem>>, vector<1x1x128xf32>
    %84 = vector.shape_cast %83 : vector<1x1x128xf32> to vector<1x128xf32>
    %c2_51 = arith.constant 2 : index
    %c2_52 = arith.constant 2 : index
    %c0_53 = arith.constant 0 : index
    %85 = vector.load %arg2[%c2_51, %c2_52, %c0_53] : memref<3x4x128xf32, #tpu.memory_space<vmem>>, vector<1x1x128xf32>
    %86 = vector.shape_cast %85 : vector<1x1x128xf32> to vector<1x128xf32>
    %cst_54 = arith.constant 0.000000e+00 : f32
    %87 = vector.broadcast %cst_54 : f32 to vector<128x128xf32>
    %88 = arith.maximumf %82, %87 : vector<128x128xf32>
    %cst_55 = arith.constant dense<0.000000e+00> : vector<128xf32>
    %89 = vector.multi_reduction <add>, %88, %cst_55 [0] : vector<128x128xf32> to vector<128xf32>
    %90 = vector.shape_cast %89 : vector<128xf32> to vector<1x128xf32>
    %cst_56 = arith.constant 7.812500e-03 : f32
    %91 = vector.broadcast %cst_56 : f32 to vector<1x128xf32>
    %92 = arith.mulf %90, %91 : vector<1x128xf32>
    %93 = arith.mulf %88, %88 : vector<128x128xf32>
    %cst_57 = arith.constant dense<0.000000e+00> : vector<128xf32>
    %94 = vector.multi_reduction <add>, %93, %cst_57 [0] : vector<128x128xf32> to vector<128xf32>
    %95 = vector.shape_cast %94 : vector<128xf32> to vector<1x128xf32>
    %cst_58 = arith.constant 7.812500e-03 : f32
    %96 = vector.broadcast %cst_58 : f32 to vector<1x128xf32>
    %97 = arith.mulf %95, %96 : vector<1x128xf32>
    %98 = arith.mulf %92, %92 : vector<1x128xf32>
    %99 = arith.subf %97, %98 : vector<1x128xf32>
    %cst_59 = arith.constant 0.000000e+00 : f32
    %100 = vector.broadcast %cst_59 : f32 to vector<1x128xf32>
    %101 = arith.maximumf %99, %100 : vector<1x128xf32>
    %cst_60 = arith.constant 9.99999974E-6 : f32
    %102 = vector.broadcast %cst_60 : f32 to vector<1x128xf32>
    %103 = arith.addf %101, %102 : vector<1x128xf32>
    %104 = math.rsqrt %103 : vector<1x128xf32>
    %105 = arith.mulf %84, %104 : vector<1x128xf32>
    %106 = arith.mulf %92, %105 : vector<1x128xf32>
    %107 = arith.subf %86, %106 : vector<1x128xf32>
    %108 = vector.broadcast %105 : vector<1x128xf32> to vector<128x128xf32>
    %109 = arith.mulf %88, %108 : vector<128x128xf32>
    %110 = vector.broadcast %107 : vector<1x128xf32> to vector<128x128xf32>
    %111 = arith.addf %109, %110 : vector<128x128xf32>
    %c3 = arith.constant 3 : index
    %c0_61 = arith.constant 0 : index
    %c0_62 = arith.constant 0 : index
    %112 = vector.load %arg1[%c3, %c0_61, %c0_62] : memref<4x128x128xf32, #tpu.memory_space<vmem>>, vector<1x128x128xf32>
    %113 = vector.shape_cast %112 : vector<1x128x128xf32> to vector<128x128xf32>
    %c0_63 = arith.constant 0 : index
    %c3_64 = arith.constant 3 : index
    %c0_65 = arith.constant 0 : index
    %114 = vector.load %arg2[%c0_63, %c3_64, %c0_65] : memref<3x4x128xf32, #tpu.memory_space<vmem>>, vector<1x1x128xf32>
    %115 = vector.shape_cast %114 : vector<1x1x128xf32> to vector<1x128xf32>
    %cst_66 = arith.constant dense<0.000000e+00> : vector<128x128xf32>
    %116 = tpu.matmul %111, %113, %cst_66 {dimension_numbers = #tpu.dot_dimension_numbers<[1], [0], [0], [1], [0, 0, 1, 1], [], []>} : vector<128x128xf32>, vector<128x128xf32>, vector<128x128xf32> -> vector<128x128xf32>
    %117 = vector.broadcast %115 : vector<1x128xf32> to vector<128x128xf32>
    %118 = arith.addf %116, %117 : vector<128x128xf32>
    %cst_67 = arith.constant 5.000000e-01 : f32
    %119 = vector.broadcast %cst_67 : f32 to vector<128x128xf32>
    %120 = arith.mulf %119, %118 : vector<128x128xf32>
    %121 = math.tanh %120 : vector<128x128xf32>
    %cst_68 = arith.constant 1.000000e+00 : f32
    %122 = vector.broadcast %cst_68 : f32 to vector<128x128xf32>
    %123 = arith.addf %121, %122 : vector<128x128xf32>
    %cst_69 = arith.constant 5.000000e-01 : f32
    %124 = vector.broadcast %cst_69 : f32 to vector<128x128xf32>
    %125 = arith.mulf %124, %123 : vector<128x128xf32>
    %c1_70 = arith.constant 1 : index
    %c0_71 = arith.constant 0 : index
    %c0_72 = arith.constant 0 : index
    %126 = vector.load %arg3[%c1_70, %c0_71, %c0_72] : memref<2x128x128xf32, #tpu.memory_space<vmem>>, vector<1x128x128xf32>
    %127 = vector.shape_cast %126 : vector<1x128x128xf32> to vector<128x128xf32>
    %128 = vector.shape_cast %125 : vector<128x128xf32> to vector<1x128x128xf32>
    tpu.vector_store %arg3[%c1_70, %c0_71, %c0_72], %128 {strides = array<i32>} : memref<2x128x128xf32, #tpu.memory_space<vmem>>, vector<1x128x128xf32>,
    return
  }
}

</mosaic_0001>

<llo_original>
// kernel: ae_forward_padded.1
$region0: #{ae_forward_padded.1}
  #allocation0 [shape = 'u32[]', space=smem, size = 0x4, offset = 0x4, fixed_abs, tag = 'smem constant byte address 0x4 - core index']
  #allocation1 [shape = 'u32[72,128]{1,0:T(1,128)}', space=vmem, size = 0x9000, scoped, tag = 'internal scratch']
  %s0 = inlined_call_operand.hbm [shape: f32[128,128], index: 0, kind: input, shape index: {}]
  %s1 = inlined_call_operand.hbm [shape: f32[4,128,128], index: 1, kind: input, shape index: {}]
  %s2 = inlined_call_operand.hbm [shape: f32[3,4,128], index: 2, kind: input, shape index: {}]
  %s3 = inlined_call_operand.hbm [shape: f32[2,128,128], index: 3, kind: output, shape index: {}]
  %s4 = sld [smem:[#allocation0]]
  $region34: #{ae_forward_padded.1} parent=0
    _
  %s6 = ssub.s32 1, %s4
  %s7 = scalar_select 0, %s6, %s4
  $region1: #{ae_forward_padded.1} parent=0
    #allocation2 [shape = 'u8[65536]{0}', space=vmem, size = 0x10000, scoped, tag = 'input window, operand 0, single buffered']
    #allocation3 [shape = 's32[1]{0}', space=sflag, size = 0x4, scoped, tag = 'scoped memory for ae_forward_padded.1']
    #allocation4 [shape = 's32[1]{0}', space=sflag, size = 0x4, scoped, tag = 'scoped memory for ae_forward_padded.1']
    #allocation5 [shape = 'u8[262144]{0}', space=vmem, size = 0x40000, scoped, tag = 'input window, operand 1, single buffered']
    #allocation6 [shape = 's32[1]{0}', space=sflag, size = 0x4, scoped, tag = 'scoped memory for ae_forward_padded.1']
    #allocation7 [shape = 'u8[6144]{0}', space=vmem, size = 0x1800, scoped, tag = 'input window, operand 2, single buffered']
    #allocation8 [shape = 'u8[131072]{0}', space=vmem, size = 0x20000, scoped, tag = 'output window, operand 0, single buffered']
    %8 = vsyncpa [#allocation3], 0
    %9 = vsyncpa [#allocation6], 0
    %10 = vsyncpa [#allocation4], 0
    // Predicated region
    $region2: #{ae_forward_padded.1} parent=1 // pred_check
      _
    $region3: #{ae_forward_padded.1} parent=1 // pred_check_branch
      %12 = sbr.rel (0) target = $region5
    $region4: #{ae_forward_padded.1} parent=1 // pred_region
      %14 = vsyncadd [#allocation3], 0
      %s15 = sshll.u32 %s0, 4
      %s16 = int_to_ptr.hbm [resolvable:$true] %s15
      %s17 = sshll.u32 [#allocation2], 4
      %s18 = int_to_ptr.vmem [resolvable:$true] %s17
      %23 = dma.hbm_to_vmem [thread:$0]  %s16, 2048, %s18, [#allocation3], 128, 128, 8
    $region5: #{ae_forward_padded.1} parent=1 // pred_fallthru
      _
    // Predicated region
    $region6: #{ae_forward_padded.1} parent=1 // pred_check
      _
    $region7: #{ae_forward_padded.1} parent=1 // pred_check_branch
      %25 = sbr.rel (0) target = $region9
    $region8: #{ae_forward_padded.1} parent=1 // pred_region
      %27 = vsyncadd [#allocation6], 0
      %s28 = sshll.u32 %s1, 4
      %s29 = int_to_ptr.hbm [resolvable:$true] %s28
      %s30 = sshll.u32 [#allocation5], 4
      %s31 = int_to_ptr.vmem [resolvable:$true] %s30
      %36 = dma.hbm_to_vmem [thread:$0]  %s29, 8192, %s31, [#allocation6], 128, 128, 8
    $region9: #{ae_forward_padded.1} parent=1 // pred_fallthru
      _
    // Predicated region
    $region10: #{ae_forward_padded.1} parent=1 // pred_check
      _
    $region11: #{ae_forward_padded.1} parent=1 // pred_check_branch
      %38 = sbr.rel (0) target = $region13
    $region12: #{ae_forward_padded.1} parent=1 // pred_region
      %40 = vsyncadd [#allocation6], 0
      %s41 = sshll.u32 %s2, 4
      %s42 = int_to_ptr.hbm [resolvable:$true] %s41
      %s43 = sshll.u32 [#allocation7], 4
      %s44 = int_to_ptr.vmem [resolvable:$true] %s43
      %49 = dma.hbm_to_vmem [thread:$0]  %s42, 192, %s44, [#allocation6], 64, 64, 4
    $region13: #{ae_forward_padded.1} parent=1 // pred_fallthru
      _
    // Predicated region
    $region14: #{ae_forward_padded.1} parent=1 // pred_check
      _
    $region15: #{ae_forward_padded.1} parent=1 // pred_check_branch
      %51 = sbr.rel (0) target = $region17
    $region16: #{ae_forward_padded.1} parent=1 // pred_region
      %53 = dma.done [#allocation3], 2048
    $region17: #{ae_forward_padded.1} parent=1 // pred_fallthru
      _
    // Predicated region
    $region18: #{ae_forward_padded.1} parent=1 // pred_check
      _
    $region19: #{ae_forward_padded.1} parent=1 // pred_check_branch
      %55 = sbr.rel (0) target = $region21
    $region20: #{ae_forward_padded.1} parent=1 // pred_region
      %57 = dma.done [#allocation6], 8192
    $region21: #{ae_forward_padded.1} parent=1 // pred_fallthru
      _
    // Predicated region
    $region22: #{ae_forward_padded.1} parent=1 // pred_check
      _
    $region23: #{ae_forward_padded.1} parent=1 // pred_check_branch
      %59 = sbr.rel (0) target = $region25
    $region24: #{ae_forward_padded.1} parent=1 // pred_region
      %61 = dma.done [#allocation6], 192
    $region25: #{ae_forward_padded.1} parent=1 // pred_fallthru
      _
    %v62 = vld [vmem:[#allocation2] sm:$0xff]
    %v63 = vld [vmem:[#allocation2 + $0x8] sm:$0xff]
    %v64 = vld [vmem:[#allocation2 + $0x10] sm:$0xff]
    %v65 = vld [vmem:[#allocation2 + $0x18] sm:$0xff]
    %v66 = vld [vmem:[#allocation2 + $0x20] sm:$0xff]
    %v67 = vld [vmem:[#allocation2 + $0x28] sm:$0xff]
    %v68 = vld [vmem:[#allocation2 + $0x30] sm:$0xff]
    %v69 = vld [vmem:[#allocation2 + $0x38] sm:$0xff]
    %v70 = vld [vmem:[#allocation2 + $0x40] sm:$0xff]
    %v71 = vld [vmem:[#allocation2 + $0x48] sm:$0xff]
    %v72 = vld [vmem:[#allocation2 + $0x50] sm:$0xff]
    %v73 = vld [vmem:[#allocation2 + $0x58] sm:$0xff]
    %v74 = vld [vmem:[#allocation2 + $0x60] sm:$0xff]
    %v75 = vld [vmem:[#allocation2 + $0x68] sm:$0xff]
    %v76 = vld [vmem:[#allocation2 + $0x70] sm:$0xff]
    %v77 = vld [vmem:[#allocation2 + $0x78] sm:$0xff]
    %v78 = vld [vmem:[#allocation5] sm:$0xff]
    %v79 = vld [vmem:[#allocation5 + $0x8] sm:$0xff]
    %v80 = vld [vmem:[#allocation5 + $0x10] sm:$0xff]
    %v81 = vld [vmem:[#allocation5 + $0x18] sm:$0xff]
    %v82 = vld [vmem:[#allocation5 + $0x20] sm:$0xff]
    %v83 = vld [vmem:[#allocation5 + $0x28] sm:$0xff]
    %v84 = vld [vmem:[#allocation5 + $0x30] sm:$0xff]
    %v85 = vld [vmem:[#allocation5 + $0x38] sm:$0xff]
    %v86 = vld [vmem:[#allocation5 + $0x40] sm:$0xff]
    %v87 = vld [vmem:[#allocation5 + $0x48] sm:$0xff]
    %v88 = vld [vmem:[#allocation5 + $0x50] sm:$0xff]
    %v89 = vld [vmem:[#allocation5 + $0x58] sm:$0xff]
    %v90 = vld [vmem:[#allocation5 + $0x60] sm:$0xff]
    %v91 = vld [vmem:[#allocation5 + $0x68] sm:$0xff]
    %v92 = vld [vmem:[#allocation5 + $0x70] sm:$0xff]
    %v93 = vld [vmem:[#allocation5 + $0x78] sm:$0xff]
    %v94 = vld [vmem:[#allocation7] sm:$0x1]
    %v95 = vperm.slane %v94, 0
    %96 = vmatpush.msra.mxu0 %v93
    %97 = vmatpush.msra.mxu0 %v92
    %98 = vmatpush.msra.mxu0 %v91
    %99 = vmatpush.msra.mxu0 %v90
    %100 = vmatpush.msra.mxu0 %v89
    %101 = vmatpush.msra.mxu0 %v88
    %102 = vmatpush.msra.mxu0 %v87
    %103 = vmatpush.msra.mxu0 %v86
    %104 = vmatpush.msra.mxu0 %v85
    %105 = vmatpush.msra.mxu0 %v84
    %106 = vmatpush.msra.mxu0 %v83
    %107 = vmatpush.msra.mxu0 %v82
    %108 = vmatpush.msra.mxu0 %v81
    %109 = vmatpush.msra.mxu0 %v80
    %110 = vmatpush.msra.mxu0 %v79
    %111 = vmatpush.msra.mxu0 %v78
    %112 = vmatmul.f32.gmra.mxu0 %v62
    %v113 = vpop.f32.mrf.mxu0
    %v114 = vadd.f32 %v95, %v113
    %115 = vmatmul.f32.gmra.mxu0 %v63
    %v116 = vpop.f32.mrf.mxu0
    %v117 = vadd.f32 %v95, %v116
    %118 = vmatmul.f32.gmra.mxu0 %v64
    %v119 = vpop.f32.mrf.mxu0
    %v120 = vadd.f32 %v95, %v119
    %121 = vmatmul.f32.gmra.mxu0 %v65
    %v122 = vpop.f32.mrf.mxu0
    %v123 = vadd.f32 %v95, %v122
    %124 = vmatmul.f32.gmra.mxu0 %v66
    %v125 = vpop.f32.mrf.mxu0
    %v126 = vadd.f32 %v95, %v125
    %127 = vmatmul.f32.gmra.mxu0 %v67
    %v128 = vpop.f32.mrf.mxu0
    %v129 = vadd.f32 %v95, %v128
    %130 = vmatmul.f32.gmra.mxu0 %v68
    %v131 = vpop.f32.mrf.mxu0
    %v132 = vadd.f32 %v95, %v131
    %133 = vmatmul.f32.gmra.mxu0 %v69
    %v134 = vpop.f32.mrf.mxu0
    %v135 = vadd.f32 %v95, %v134
    %136 = vmatmul.f32.gmra.mxu0 %v70
    %v137 = vpop.f32.mrf.mxu0
    %v138 = vadd.f32 %v95, %v137
    %139 = vmatmul.f32.gmra.mxu0 %v71
    %v140 = vpop.f32.mrf.mxu0
    %v141 = vadd.f32 %v95, %v140
    %142 = vmatmul.f32.gmra.mxu0 %v72
    %v143 = vpop.f32.mrf.mxu0
    %v144 = vadd.f32 %v95, %v143
    %145 = vmatmul.f32.gmra.mxu0 %v73
    %v146 = vpop.f32.mrf.mxu0
    %v147 = vadd.f32 %v95, %v146
    %148 = vmatmul.f32.gmra.mxu0 %v74
    %v149 = vpop.f32.mrf.mxu0
    %v150 = vadd.f32 %v95, %v149
    %151 = vmatmul.f32.gmra.mxu0 %v75
    %v152 = vpop.f32.mrf.mxu0
    %v153 = vadd.f32 %v95, %v152
    %154 = vmatmul.f32.gmra.mxu0 %v76
    %v155 = vpop.f32.mrf.mxu0
    %v156 = vadd.f32 %v95, %v155
    %157 = vmatmul.f32.gmra.mxu0 %v77
    %v158 = vpop.f32.mrf.mxu0
    %v159 = vadd.f32 %v95, %v158
    %160 = vdwg.mxu0
    %s161 = scalar_lea.vmem [#allocation7], 4
    %v162 = vld [vmem:[%s161] sm:$0x1]
    %s163 = scalar_lea.vmem [#allocation7], 8
    %v164 = vld [vmem:[%s163] sm:$0x1]
    %v165 = vmax.f32 %v114, 0.0
    %v166 = vmax.f32 %v117, 0.0
    %v167 = vmax.f32 %v120, 0.0
    %v168 = vmax.f32 %v123, 0.0
    %v169 = vmax.f32 %v126, 0.0
    %v170 = vmax.f32 %v129, 0.0
    %v171 = vmax.f32 %v132, 0.0
    %v172 = vmax.f32 %v135, 0.0
    %v173 = vmax.f32 %v138, 0.0
    %v174 = vmax.f32 %v141, 0.0
    %v175 = vmax.f32 %v144, 0.0
    %v176 = vmax.f32 %v147, 0.0
    %v177 = vmax.f32 %v150, 0.0
    %v178 = vmax.f32 %v153, 0.0
    %v179 = vmax.f32 %v156, 0.0
    %v180 = vmax.f32 %v159, 0.0
    %v181 = vadd.f32 %v165, %v166
    %v182 = vadd.f32 %v181, %v167
    %v183 = vadd.f32 %v182, %v168
    %v184 = vadd.f32 %v183, %v169
    %v185 = vadd.f32 %v184, %v170
    %v186 = vadd.f32 %v185, %v171
    %v187 = vadd.f32 %v186, %v172
    %v188 = vadd.f32 %v187, %v173
    %v189 = vadd.f32 %v188, %v174
    %v190 = vadd.f32 %v189, %v175
    %v191 = vadd.f32 %v190, %v176
    %v192 = vadd.f32 %v191, %v177
    %v193 = vadd.f32 %v192, %v178
    %v194 = vadd.f32 %v193, %v179
    %v195 = vadd.f32 %v194, %v180
    %v196 = vrot.slane %v195, 4
    %v197 = vadd.f32 %v195, %v196
    %v198 = vrot.slane %v197, 2
    %v199 = vadd.f32 %v197, %v198
    %v200 = vrot.slane %v199, 1
    %v201 = vadd.f32 %v199, %v200
    %v202 = vmul.f32 %v201, 0.0078125
    %v203 = vmul.f32 %v165, %v165
    %v204 = vmul.f32 %v166, %v166
    %v205 = vmul.f32 %v167, %v167
    %v206 = vmul.f32 %v168, %v168
    %v207 = vmul.f32 %v169, %v169
    %v208 = vmul.f32 %v170, %v170
    %v209 = vmul.f32 %v171, %v171
    %v210 = vmul.f32 %v172, %v172
    %v211 = vmul.f32 %v173, %v173
    %v212 = vmul.f32 %v174, %v174
    %v213 = vmul.f32 %v175, %v175
    %v214 = vmul.f32 %v176, %v176
    %v215 = vmul.f32 %v177, %v177
    %v216 = vmul.f32 %v178, %v178
    %v217 = vmul.f32 %v179, %v179
    %v218 = vmul.f32 %v180, %v180
    %v219 = vadd.f32 %v203, %v204
    %v220 = vadd.f32 %v219, %v205
    %v221 = vadd.f32 %v220, %v206
    %v222 = vadd.f32 %v221, %v207
    %v223 = vadd.f32 %v222, %v208
    %v224 = vadd.f32 %v223, %v209
    %v225 = vadd.f32 %v224, %v210
    %v226 = vadd.f32 %v225, %v211
    %v227 = vadd.f32 %v226, %v212
    %v228 = vadd.f32 %v227, %v213
    %v229 = vadd.f32 %v228, %v214
    %v230 = vadd.f32 %v229, %v215
    %v231 = vadd.f32 %v230, %v216
    %v232 = vadd.f32 %v231, %v217
    %v233 = vadd.f32 %v232, %v218
    %v234 = vrot.slane %v233, 4
    %v235 = vadd.f32 %v233, %v234
    %v236 = vrot.slane %v235, 2
    %v237 = vadd.f32 %v235, %v236
    %v238 = vrot.slane %v237, 1
    %v239 = vadd.f32 %v237, %v238
    %v240 = vmul.f32 %v239, 0.0078125
    %v241 = vmul.f32 %v202, %v202
    %v242 = vsub.f32 %v240, %v241
    %v243 = vmax.f32 %v242, 0.0
    %v244 = vadd.f32 %v243, 1e-05
    %v245 = vrsqrt.pop %v244
    %v246 = vmul.f32 %v245, %v244
    %v247 = vmul.f32 %v246, %v245
    %v248 = vmul.f32 0.5, %v247
    %v249 = vsub.f32 1.5, %v248
    %v250 = vmul.f32 %v245, %v249
    %vm251 = vweird.f32 %v244
    %vm252 = vweird.f32 %v245
    %vm253 = vmor %vm251, %vm252
    %v254 = vsel %vm253, %v245, %v250
    %v255 = vmul.f32 %v162, %v254
    %v256 = vmul.f32 %v202, %v255
    %v257 = vsub.f32 %v164, %v256
    %v258 = vperm.slane %v255, 0
    %v259 = vmul.f32 %v165, %v258
    %v260 = vmul.f32 %v166, %v258
    %v261 = vmul.f32 %v167, %v258
    %v262 = vmul.f32 %v168, %v258
    %v263 = vmul.f32 %v169, %v258
    %v264 = vmul.f32 %v170, %v258
    %v265 = vmul.f32 %v171, %v258
    %v266 = vmul.f32 %v172, %v258
    %v267 = vmul.f32 %v173, %v258
    %v268 = vmul.f32 %v174, %v258
    %v269 = vmul.f32 %v175, %v258
    %v270 = vmul.f32 %v176, %v258
    %v271 = vmul.f32 %v177, %v258
    %v272 = vmul.f32 %v178, %v258
    %v273 = vmul.f32 %v179, %v258
    %v274 = vmul.f32 %v180, %v258
    %v275 = vperm.slane %v257, 0
    %v276 = vadd.f32 %v259, %v275
    %v277 = vadd.f32 %v260, %v275
    %v278 = vadd.f32 %v261, %v275
    %v279 = vadd.f32 %v262, %v275
    %v280 = vadd.f32 %v263, %v275
    %v281 = vadd.f32 %v264, %v275
    %v282 = vadd.f32 %v265, %v275
    %v283 = vadd.f32 %v266, %v275
    %v284 = vadd.f32 %v267, %v275
    %v285 = vadd.f32 %v268, %v275
    %v286 = vadd.f32 %v269, %v275
    %v287 = vadd.f32 %v270, %v275
    %v288 = vadd.f32 %v271, %v275
    %v289 = vadd.f32 %v272, %v275
    %v290 = vadd.f32 %v273, %v275
    %v291 = vadd.f32 %v274, %v275
    %s292 = scalar_lea.vmem [#allocation5], 128
    %v293 = vld [vmem:[%s292] sm:$0xff]
    %v294 = vld [vmem:[%s292 + $0x8] sm:$0xff]
    %v295 = vld [vmem:[%s292 + $0x10] sm:$0xff]
    %v296 = vld [vmem:[%s292 + $0x18] sm:$0xff]
    %v297 = vld [vmem:[%s292 + $0x20] sm:$0xff]
    %v298 = vld [vmem:[%s292 + $0x28] sm:$0xff]
    %v299 = vld [vmem:[%s292 + $0x30] sm:$0xff]
    %v300 = vld [vmem:[%s292 + $0x38] sm:$0xff]
    %v301 = vld [vmem:[%s292 + $0x40] sm:$0xff]
    %v302 = vld [vmem:[%s292 + $0x48] sm:$0xff]
    %v303 = vld [vmem:[%s292 + $0x50] sm:$0xff]
    %v304 = vld [vmem:[%s292 + $0x58] sm:$0xff]
    %v305 = vld [vmem:[%s292 + $0x60] sm:$0xff]
    %v306 = vld [vmem:[%s292 + $0x68] sm:$0xff]
    %v307 = vld [vmem:[%s292 + $0x70] sm:$0xff]
    %v308 = vld [vmem:[%s292 + $0x78] sm:$0xff]
    %v309 = vld [vmem:[#allocation7 + $0x1] sm:$0x1]
    %v310 = vperm.slane %v309, 0
    %311 = vmatpush.msra.mxu0 %v308
    %312 = vmatpush.msra.mxu0 %v307
    %313 = vmatpush.msra.mxu0 %v306
    %314 = vmatpush.msra.mxu0 %v305
    %315 = vmatpush.msra.mxu0 %v304
    %316 = vmatpush.msra.mxu0 %v303
    %317 = vmatpush.msra.mxu0 %v302
    %318 = vmatpush.msra.mxu0 %v301
    %319 = vmatpush.msra.mxu0 %v300
    %320 = vmatpush.msra.mxu0 %v299
    %321 = vmatpush.msra.mxu0 %v298
    %322 = vmatpush.msra.mxu0 %v297
    %323 = vmatpush.msra.mxu0 %v296
    %324 = vmatpush.msra.mxu0 %v295
    %325 = vmatpush.msra.mxu0 %v294
    %326 = vmatpush.msra.mxu0 %v293
    %327 = vmatmul.f32.gmra.mxu0 %v276
    %v328 = vpop.f32.mrf.mxu0
    %v329 = vadd.f32 %v310, %v328
    %330 = vmatmul.f32.gmra.mxu0 %v277
    %v331 = vpop.f32.mrf.mxu0
    %v332 = vadd.f32 %v310, %v331
    %333 = vmatmul.f32.gmra.mxu0 %v278
    %v334 = vpop.f32.mrf.mxu0
    %v335 = vadd.f32 %v310, %v334
    %336 = vmatmul.f32.gmra.mxu0 %v279
    %v337 = vpop.f32.mrf.mxu0
    %v338 = vadd.f32 %v310, %v337
    %339 = vmatmul.f32.gmra.mxu0 %v280
    %v340 = vpop.f32.mrf.mxu0
    %v341 = vadd.f32 %v310, %v340
    %342 = vmatmul.f32.gmra.mxu0 %v281
    %v343 = vpop.f32.mrf.mxu0
    %v344 = vadd.f32 %v310, %v343
    %345 = vmatmul.f32.gmra.mxu0 %v282
    %v346 = vpop.f32.mrf.mxu0
    %v347 = vadd.f32 %v310, %v346
    %348 = vmatmul.f32.gmra.mxu0 %v283
    %v349 = vpop.f32.mrf.mxu0
    %v350 = vadd.f32 %v310, %v349
    %351 = vmatmul.f32.gmra.mxu0 %v284
    %v352 = vpop.f32.mrf.mxu0
    %v353 = vadd.f32 %v310, %v352
    %354 = vmatmul.f32.gmra.mxu0 %v285
    %v355 = vpop.f32.mrf.mxu0
    %v356 = vadd.f32 %v310, %v355
    %357 = vmatmul.f32.gmra.mxu0 %v286
    %v358 = vpop.f32.mrf.mxu0
    %v359 = vadd.f32 %v310, %v358
    %360 = vmatmul.f32.gmra.mxu0 %v287
    %v361 = vpop.f32.mrf.mxu0
    %v362 = vadd.f32 %v310, %v361
    %363 = vmatmul.f32.gmra.mxu0 %v288
    %v364 = vpop.f32.mrf.mxu0
    %v365 = vadd.f32 %v310, %v364
    %366 = vmatmul.f32.gmra.mxu0 %v289
    %v367 = vpop.f32.mrf.mxu0
    %v368 = vadd.f32 %v310, %v367
    %369 = vmatmul.f32.gmra.mxu0 %v290
    %v370 = vpop.f32.mrf.mxu0
    %v371 = vadd.f32 %v310, %v370
    %372 = vmatmul.f32.gmra.mxu0 %v291
    %v373 = vpop.f32.mrf.mxu0
    %v374 = vadd.f32 %v310, %v373
    %375 = vdwg.mxu0
    %v376 = vld [vmem:[%s161 + $0x1] sm:$0x1]
    %v377 = vld [vmem:[%s163 + $0x1] sm:$0x1]
    %v378 = vmax.f32 %v329, 0.0
    %v379 = vmax.f32 %v332, 0.0
    %v380 = vmax.f32 %v335, 0.0
    %v381 = vmax.f32 %v338, 0.0
    %v382 = vmax.f32 %v341, 0.0
    %v383 = vmax.f32 %v344, 0.0
    %v384 = vmax.f32 %v347, 0.0
    %v385 = vmax.f32 %v350, 0.0
    %v386 = vmax.f32 %v353, 0.0
    %v387 = vmax.f32 %v356, 0.0
    %v388 = vmax.f32 %v359, 0.0
    %v389 = vmax.f32 %v362, 0.0
    %v390 = vmax.f32 %v365, 0.0
    %v391 = vmax.f32 %v368, 0.0
    %v392 = vmax.f32 %v371, 0.0
    %v393 = vmax.f32 %v374, 0.0
    %v394 = vadd.f32 %v378, %v379
    %v395 = vadd.f32 %v394, %v380
    %v396 = vadd.f32 %v395, %v381
    %v397 = vadd.f32 %v396, %v382
    %v398 = vadd.f32 %v397, %v383
    %v399 = vadd.f32 %v398, %v384
    %v400 = vadd.f32 %v399, %v385
    %v401 = vadd.f32 %v400, %v386
    %v402 = vadd.f32 %v401, %v387
    %v403 = vadd.f32 %v402, %v388
    %v404 = vadd.f32 %v403, %v389
    %v405 = vadd.f32 %v404, %v390
    %v406 = vadd.f32 %v405, %v391
    %v407 = vadd.f32 %v406, %v392
    %v408 = vadd.f32 %v407, %v393
    %v409 = vrot.slane %v408, 4
    %v410 = vadd.f32 %v408, %v409
    %v411 = vrot.slane %v410, 2
    %v412 = vadd.f32 %v410, %v411
    %v413 = vrot.slane %v412, 1
    %v414 = vadd.f32 %v412, %v413
    %v415 = vmul.f32 %v414, 0.0078125
    %v416 = vmul.f32 %v378, %v378
    %v417 = vmul.f32 %v379, %v379
    %v418 = vmul.f32 %v380, %v380
    %v419 = vmul.f32 %v381, %v381
    %v420 = vmul.f32 %v382, %v382
    %v421 = vmul.f32 %v383, %v383
    %v422 = vmul.f32 %v384, %v384
    %v423 = vmul.f32 %v385, %v385
    %v424 = vmul.f32 %v386, %v386
    %v425 = vmul.f32 %v387, %v387
    %v426 = vmul.f32 %v388, %v388
    %v427 = vmul.f32 %v389, %v389
    %v428 = vmul.f32 %v390, %v390
    %v429 = vmul.f32 %v391, %v391
    %v430 = vmul.f32 %v392, %v392
    %v431 = vmul.f32 %v393, %v393
    %v432 = vadd.f32 %v416, %v417
    %v433 = vadd.f32 %v432, %v418
    %v434 = vadd.f32 %v433, %v419
    %v435 = vadd.f32 %v434, %v420
    %v436 = vadd.f32 %v435, %v421
    %v437 = vadd.f32 %v436, %v422
    %v438 = vadd.f32 %v437, %v423
    %v439 = vadd.f32 %v438, %v424
    %v440 = vadd.f32 %v439, %v425
    %v441 = vadd.f32 %v440, %v426
    %v442 = vadd.f32 %v441, %v427
    %v443 = vadd.f32 %v442, %v428
    %v444 = vadd.f32 %v443, %v429
    %v445 = vadd.f32 %v444, %v430
    %v446 = vadd.f32 %v445, %v431
    %v447 = vrot.slane %v446, 4
    %v448 = vadd.f32 %v446, %v447
    %v449 = vrot.slane %v448, 2
    %v450 = vadd.f32 %v448, %v449
    %v451 = vrot.slane %v450, 1
    %v452 = vadd.f32 %v450, %v451
    %v453 = vmul.f32 %v452, 0.0078125
    %v454 = vmul.f32 %v415, %v415
    %v455 = vsub.f32 %v453, %v454
    %v456 = vmax.f32 %v455, 0.0
    %v457 = vadd.f32 %v456, 1e-05
    %v458 = vrsqrt.pop %v457
    %v459 = vmul.f32 %v458, %v457
    %v460 = vmul.f32 %v459, %v458
    %v461 = vmul.f32 0.5, %v460
    %v462 = vsub.f32 1.5, %v461
    %v463 = vmul.f32 %v458, %v462
    %vm464 = vweird.f32 %v457
    %vm465 = vweird.f32 %v458
    %vm466 = vmor %vm464, %vm465
    %v467 = vsel %vm466, %v458, %v463
    %v468 = vmul.f32 %v376, %v467
    %v469 = vmul.f32 %v415, %v468
    %v470 = vsub.f32 %v377, %v469
    %v471 = vperm.slane %v468, 0
    %v472 = vmul.f32 %v378, %v471
    %v473 = vmul.f32 %v379, %v471
    %v474 = vmul.f32 %v380, %v471
    %v475 = vmul.f32 %v381, %v471
    %v476 = vmul.f32 %v382, %v471
    %v477 = vmul.f32 %v383, %v471
    %v478 = vmul.f32 %v384, %v471
    %v479 = vmul.f32 %v385, %v471
    %v480 = vmul.f32 %v386, %v471
    %v481 = vmul.f32 %v387, %v471
    %v482 = vmul.f32 %v388, %v471
    %v483 = vmul.f32 %v389, %v471
    %v484 = vmul.f32 %v390, %v471
    %v485 = vmul.f32 %v391, %v471
    %v486 = vmul.f32 %v392, %v471
    %v487 = vmul.f32 %v393, %v471
    %v488 = vperm.slane %v470, 0
    %v489 = vadd.f32 %v472, %v488
    %v490 = vadd.f32 %v473, %v488
    %v491 = vadd.f32 %v474, %v488
    %v492 = vadd.f32 %v475, %v488
    %v493 = vadd.f32 %v476, %v488
    %v494 = vadd.f32 %v477, %v488
    %v495 = vadd.f32 %v478, %v488
    %v496 = vadd.f32 %v479, %v488
    %v497 = vadd.f32 %v480, %v488
    %v498 = vadd.f32 %v481, %v488
    %v499 = vadd.f32 %v482, %v488
    %v500 = vadd.f32 %v483, %v488
    %v501 = vadd.f32 %v484, %v488
    %v502 = vadd.f32 %v485, %v488
    %v503 = vadd.f32 %v486, %v488
    %v504 = vadd.f32 %v487, %v488
    %505 = vst [vmem:[#allocation8] sm:$0xff] %v489
    %506 = vst [vmem:[#allocation8 + $0x8] sm:$0xff] %v490
    %507 = vst [vmem:[#allocation8 + $0x10] sm:$0xff] %v491
    %508 = vst [vmem:[#allocation8 + $0x18] sm:$0xff] %v492
    %509 = vst [vmem:[#allocation8 + $0x20] sm:$0xff] %v493
    %510 = vst [vmem:[#allocation8 + $0x28] sm:$0xff] %v494
    %511 = vst [vmem:[#allocation8 + $0x30] sm:$0xff] %v495
    %512 = vst [vmem:[#allocation8 + $0x38] sm:$0xff] %v496
    %513 = vst [vmem:[#allocation8 + $0x40] sm:$0xff] %v497
    %514 = vst [vmem:[#allocation8 + $0x48] sm:$0xff] %v498
    %515 = vst [vmem:[#allocation8 + $0x50] sm:$0xff] %v499
    %516 = vst [vmem:[#allocation8 + $0x58] sm:$0xff] %v500
    %517 = vst [vmem:[#allocation8 + $0x60] sm:$0xff] %v501
    %518 = vst [vmem:[#allocation8 + $0x68] sm:$0xff] %v502
    %519 = vst [vmem:[#allocation8 + $0x70] sm:$0xff] %v503
    %520 = vst [vmem:[#allocation8 + $0x78] sm:$0xff] %v504
    %s521 = scalar_lea.vmem [#allocation5], 256
    %v522 = vld [vmem:[%s521] sm:$0xff]
    %v523 = vld [vmem:[%s521 + $0x8] sm:$0xff]
    %v524 = vld [vmem:[%s521 + $0x10] sm:$0xff]
    %v525 = vld [vmem:[%s521 + $0x18] sm:$0xff]
    %v526 = vld [vmem:[%s521 + $0x20] sm:$0xff]
    %v527 = vld [vmem:[%s521 + $0x28] sm:$0xff]
    %v528 = vld [vmem:[%s521 + $0x30] sm:$0xff]
    %v529 = vld [vmem:[%s521 + $0x38] sm:$0xff]
    %v530 = vld [vmem:[%s521 + $0x40] sm:$0xff]
    %v531 = vld [vmem:[%s521 + $0x48] sm:$0xff]
    %v532 = vld [vmem:[%s521 + $0x50] sm:$0xff]
    %v533 = vld [vmem:[%s521 + $0x58] sm:$0xff]
    %v534 = vld [vmem:[%s521 + $0x60] sm:$0xff]
    %v535 = vld [vmem:[%s521 + $0x68] sm:$0xff]
    %v536 = vld [vmem:[%s521 + $0x70] sm:$0xff]
    %v537 = vld [vmem:[%s521 + $0x78] sm:$0xff]
    %v538 = vld [vmem:[#allocation7 + $0x2] sm:$0x1]
    %v539 = vperm.slane %v538, 0
    %540 = vmatpush.msra.mxu0 %v537
    %541 = vmatpush.msra.mxu0 %v536
    %542 = vmatpush.msra.mxu0 %v535
    %543 = vmatpush.msra.mxu0 %v534
    %544 = vmatpush.msra.mxu0 %v533
    %545 = vmatpush.msra.mxu0 %v532
    %546 = vmatpush.msra.mxu0 %v531
    %547 = vmatpush.msra.mxu0 %v530
    %548 = vmatpush.msra.mxu0 %v529
    %549 = vmatpush.msra.mxu0 %v528
    %550 = vmatpush.msra.mxu0 %v527
    %551 = vmatpush.msra.mxu0 %v526
    %552 = vmatpush.msra.mxu0 %v525
    %553 = vmatpush.msra.mxu0 %v524
    %554 = vmatpush.msra.mxu0 %v523
    %555 = vmatpush.msra.mxu0 %v522
    %556 = vmatmul.f32.gmra.mxu0 %v489
    %v557 = vpop.f32.mrf.mxu0
    %v558 = vadd.f32 %v539, %v557
    %559 = vmatmul.f32.gmra.mxu0 %v490
    %v560 = vpop.f32.mrf.mxu0
    %v561 = vadd.f32 %v539, %v560
    %562 = vmatmul.f32.gmra.mxu0 %v491
    %v563 = vpop.f32.mrf.mxu0
    %v564 = vadd.f32 %v539, %v563
    %565 = vmatmul.f32.gmra.mxu0 %v492
    %v566 = vpop.f32.mrf.mxu0
    %v567 = vadd.f32 %v539, %v566
    %568 = vmatmul.f32.gmra.mxu0 %v493
    %v569 = vpop.f32.mrf.mxu0
    %v570 = vadd.f32 %v539, %v569
    %571 = vmatmul.f32.gmra.mxu0 %v494
    %v572 = vpop.f32.mrf.mxu0
    %v573 = vadd.f32 %v539, %v572
    %574 = vmatmul.f32.gmra.mxu0 %v495
    %v575 = vpop.f32.mrf.mxu0
    %v576 = vadd.f32 %v539, %v575
    %577 = vmatmul.f32.gmra.mxu0 %v496
    %v578 = vpop.f32.mrf.mxu0
    %v579 = vadd.f32 %v539, %v578
    %580 = vmatmul.f32.gmra.mxu0 %v497
    %v581 = vpop.f32.mrf.mxu0
    %v582 = vadd.f32 %v539, %v581
    %583 = vmatmul.f32.gmra.mxu0 %v498
    %v584 = vpop.f32.mrf.mxu0
    %v585 = vadd.f32 %v539, %v584
    %586 = vmatmul.f32.gmra.mxu0 %v499
    %v587 = vpop.f32.mrf.mxu0
    %v588 = vadd.f32 %v539, %v587
    %589 = vmatmul.f32.gmra.mxu0 %v500
    %v590 = vpop.f32.mrf.mxu0
    %v591 = vadd.f32 %v539, %v590
    %592 = vmatmul.f32.gmra.mxu0 %v501
    %v593 = vpop.f32.mrf.mxu0
    %v594 = vadd.f32 %v539, %v593
    %595 = vmatmul.f32.gmra.mxu0 %v502
    %v596 = vpop.f32.mrf.mxu0
    %v597 = vadd.f32 %v539, %v596
    %598 = vmatmul.f32.gmra.mxu0 %v503
    %v599 = vpop.f32.mrf.mxu0
    %v600 = vadd.f32 %v539, %v599
    %601 = vmatmul.f32.gmra.mxu0 %v504
    %v602 = vpop.f32.mrf.mxu0
    %v603 = vadd.f32 %v539, %v602
    %604 = vdwg.mxu0
    %v605 = vld [vmem:[%s161 + $0x2] sm:$0x1]
    %v606 = vld [vmem:[%s163 + $0x2] sm:$0x1]
    %v607 = vmax.f32 %v558, 0.0
    %v608 = vmax.f32 %v561, 0.0
    %v609 = vmax.f32 %v564, 0.0
    %v610 = vmax.f32 %v567, 0.0
    %v611 = vmax.f32 %v570, 0.0
    %v612 = vmax.f32 %v573, 0.0
    %v613 = vmax.f32 %v576, 0.0
    %v614 = vmax.f32 %v579, 0.0
    %v615 = vmax.f32 %v582, 0.0
    %v616 = vmax.f32 %v585, 0.0
    %v617 = vmax.f32 %v588, 0.0
    %v618 = vmax.f32 %v591, 0.0
    %v619 = vmax.f32 %v594, 0.0
    %v620 = vmax.f32 %v597, 0.0
    %v621 = vmax.f32 %v600, 0.0
    %v622 = vmax.f32 %v603, 0.0
    %v623 = vadd.f32 %v607, %v608
    %v624 = vadd.f32 %v623, %v609
    %v625 = vadd.f32 %v624, %v610
    %v626 = vadd.f32 %v625, %v611
    %v627 = vadd.f32 %v626, %v612
    %v628 = vadd.f32 %v627, %v613
    %v629 = vadd.f32 %v628, %v614
    %v630 = vadd.f32 %v629, %v615
    %v631 = vadd.f32 %v630, %v616
    %v632 = vadd.f32 %v631, %v617
    %v633 = vadd.f32 %v632, %v618
    %v634 = vadd.f32 %v633, %v619
    %v635 = vadd.f32 %v634, %v620
    %v636 = vadd.f32 %v635, %v621
    %v637 = vadd.f32 %v636, %v622
    %v638 = vrot.slane %v637, 4
    %v639 = vadd.f32 %v637, %v638
    %v640 = vrot.slane %v639, 2
    %v641 = vadd.f32 %v639, %v640
    %v642 = vrot.slane %v641, 1
    %v643 = vadd.f32 %v641, %v642
    %v644 = vmul.f32 %v643, 0.0078125
    %v645 = vmul.f32 %v607, %v607
    %v646 = vmul.f32 %v608, %v608
    %v647 = vmul.f32 %v609, %v609
    %v648 = vmul.f32 %v610, %v610
    %v649 = vmul.f32 %v611, %v611
    %v650 = vmul.f32 %v612, %v612
    %v651 = vmul.f32 %v613, %v613
    %v652 = vmul.f32 %v614, %v614
    %v653 = vmul.f32 %v615, %v615
    %v654 = vmul.f32 %v616, %v616
    %v655 = vmul.f32 %v617, %v617
    %v656 = vmul.f32 %v618, %v618
    %v657 = vmul.f32 %v619, %v619
    %v658 = vmul.f32 %v620, %v620
    %v659 = vmul.f32 %v621, %v621
    %v660 = vmul.f32 %v622, %v622
    %v661 = vadd.f32 %v645, %v646
    %v662 = vadd.f32 %v661, %v647
    %v663 = vadd.f32 %v662, %v648
    %v664 = vadd.f32 %v663, %v649
    %v665 = vadd.f32 %v664, %v650
    %v666 = vadd.f32 %v665, %v651
    %v667 = vadd.f32 %v666, %v652
    %v668 = vadd.f32 %v667, %v653
    %v669 = vadd.f32 %v668, %v654
    %v670 = vadd.f32 %v669, %v655
    %v671 = vadd.f32 %v670, %v656
    %v672 = vadd.f32 %v671, %v657
    %v673 = vadd.f32 %v672, %v658
    %v674 = vadd.f32 %v673, %v659
    %v675 = vadd.f32 %v674, %v660
    %v676 = vrot.slane %v675, 4
    %v677 = vadd.f32 %v675, %v676
    %v678 = vrot.slane %v677, 2
    %v679 = vadd.f32 %v677, %v678
    %v680 = vrot.slane %v679, 1
    %v681 = vadd.f32 %v679, %v680
    %v682 = vmul.f32 %v681, 0.0078125
    %v683 = vmul.f32 %v644, %v644
    %v684 = vsub.f32 %v682, %v683
    %v685 = vmax.f32 %v684, 0.0
    %v686 = vadd.f32 %v685, 1e-05
    %v687 = vrsqrt.pop %v686
    %v688 = vmul.f32 %v687, %v686
    %v689 = vmul.f32 %v688, %v687
    %v690 = vmul.f32 0.5, %v689
    %v691 = vsub.f32 1.5, %v690
    %v692 = vmul.f32 %v687, %v691
    %vm693 = vweird.f32 %v686
    %vm694 = vweird.f32 %v687
    %vm695 = vmor %vm693, %vm694
    %v696 = vsel %vm695, %v687, %v692
    %v697 = vmul.f32 %v605, %v696
    %v698 = vmul.f32 %v644, %v697
    %v699 = vsub.f32 %v606, %v698
    %v700 = vperm.slane %v697, 0
    %v701 = vmul.f32 %v607, %v700
    %v702 = vmul.f32 %v608, %v700
    %v703 = vmul.f32 %v609, %v700
    %v704 = vmul.f32 %v610, %v700
    %v705 = vmul.f32 %v611, %v700
    %v706 = vmul.f32 %v612, %v700
    %v707 = vmul.f32 %v613, %v700
    %v708 = vmul.f32 %v614, %v700
    %v709 = vmul.f32 %v615, %v700
    %v710 = vmul.f32 %v616, %v700
    %v711 = vmul.f32 %v617, %v700
    %v712 = vmul.f32 %v618, %v700
    %v713 = vmul.f32 %v619, %v700
    %v714 = vmul.f32 %v620, %v700
    %v715 = vmul.f32 %v621, %v700
    %v716 = vmul.f32 %v622, %v700
    %v717 = vperm.slane %v699, 0
    %v718 = vadd.f32 %v701, %v717
    %v719 = vadd.f32 %v702, %v717
    %v720 = vadd.f32 %v703, %v717
    %v721 = vadd.f32 %v704, %v717
    %v722 = vadd.f32 %v705, %v717
    %v723 = vadd.f32 %v706, %v717
    %v724 = vadd.f32 %v707, %v717
    %v725 = vadd.f32 %v708, %v717
    %v726 = vadd.f32 %v709, %v717
    %v727 = vadd.f32 %v710, %v717
    %v728 = vadd.f32 %v711, %v717
    %v729 = vadd.f32 %v712, %v717
    %v730 = vadd.f32 %v713, %v717
    %v731 = vadd.f32 %v714, %v717
    %v732 = vadd.f32 %v715, %v717
    %v733 = vadd.f32 %v716, %v717
    %s734 = scalar_lea.vmem [#allocation5], 384
    %v735 = vld [vmem:[%s734] sm:$0xff]
    %v736 = vld [vmem:[%s734 + $0x8] sm:$0xff]
    %v737 = vld [vmem:[%s734 + $0x10] sm:$0xff]
    %v738 = vld [vmem:[%s734 + $0x18] sm:$0xff]
    %v739 = vld [vmem:[%s734 + $0x20] sm:$0xff]
    %v740 = vld [vmem:[%s734 + $0x28] sm:$0xff]
    %v741 = vld [vmem:[%s734 + $0x30] sm:$0xff]
    %v742 = vld [vmem:[%s734 + $0x38] sm:$0xff]
    %v743 = vld [vmem:[%s734 + $0x40] sm:$0xff]
    %v744 = vld [vmem:[%s734 + $0x48] sm:$0xff]
    %v745 = vld [vmem:[%s734 + $0x50] sm:$0xff]
    %v746 = vld [vmem:[%s734 + $0x58] sm:$0xff]
    %v747 = vld [vmem:[%s734 + $0x60] sm:$0xff]
    %v748 = vld [vmem:[%s734 + $0x68] sm:$0xff]
    %v749 = vld [vmem:[%s734 + $0x70] sm:$0xff]
    %v750 = vld [vmem:[%s734 + $0x78] sm:$0xff]
    %v751 = vld [vmem:[#allocation7 + $0x3] sm:$0x1]
    %v752 = vperm.slane %v751, 0
    %753 = vmatpush.msra.mxu0 %v750
    %754 = vmatpush.msra.mxu0 %v749
    %755 = vmatpush.msra.mxu0 %v748
    %756 = vmatpush.msra.mxu0 %v747
    %757 = vmatpush.msra.mxu0 %v746
    %758 = vmatpush.msra.mxu0 %v745
    %759 = vmatpush.msra.mxu0 %v744
    %760 = vmatpush.msra.mxu0 %v743
    %761 = vmatpush.msra.mxu0 %v742
    %762 = vmatpush.msra.mxu0 %v741
    %763 = vmatpush.msra.mxu0 %v740
    %764 = vmatpush.msra.mxu0 %v739
    %765 = vmatpush.msra.mxu0 %v738
    %766 = vmatpush.msra.mxu0 %v737
    %767 = vmatpush.msra.mxu0 %v736
    %768 = vmatpush.msra.mxu0 %v735
    %769 = vmatmul.f32.gmra.mxu0 %v718
    %v770 = vpop.f32.mrf.mxu0
    %v771 = vadd.f32 %v752, %v770
    %772 = vmatmul.f32.gmra.mxu0 %v719
    %v773 = vpop.f32.mrf.mxu0
    %v774 = vadd.f32 %v752, %v773
    %775 = vmatmul.f32.gmra.mxu0 %v720
    %v776 = vpop.f32.mrf.mxu0
    %v777 = vadd.f32 %v752, %v776
    %778 = vmatmul.f32.gmra.mxu0 %v721
    %v779 = vpop.f32.mrf.mxu0
    %v780 = vadd.f32 %v752, %v779
    %781 = vmatmul.f32.gmra.mxu0 %v722
    %v782 = vpop.f32.mrf.mxu0
    %v783 = vadd.f32 %v752, %v782
    %784 = vmatmul.f32.gmra.mxu0 %v723
    %v785 = vpop.f32.mrf.mxu0
    %v786 = vadd.f32 %v752, %v785
    %787 = vmatmul.f32.gmra.mxu0 %v724
    %v788 = vpop.f32.mrf.mxu0
    %v789 = vadd.f32 %v752, %v788
    %790 = vmatmul.f32.gmra.mxu0 %v725
    %v791 = vpop.f32.mrf.mxu0
    %v792 = vadd.f32 %v752, %v791
    %793 = vmatmul.f32.gmra.mxu0 %v726
    %v794 = vpop.f32.mrf.mxu0
    %v795 = vadd.f32 %v752, %v794
    %796 = vmatmul.f32.gmra.mxu0 %v727
    %v797 = vpop.f32.mrf.mxu0
    %v798 = vadd.f32 %v752, %v797
    %799 = vmatmul.f32.gmra.mxu0 %v728
    %v800 = vpop.f32.mrf.mxu0
    %v801 = vadd.f32 %v752, %v800
    %802 = vmatmul.f32.gmra.mxu0 %v729
    %v803 = vpop.f32.mrf.mxu0
    %v804 = vadd.f32 %v752, %v803
    %805 = vmatmul.f32.gmra.mxu0 %v730
    %v806 = vpop.f32.mrf.mxu0
    %v807 = vadd.f32 %v752, %v806
    %808 = vmatmul.f32.gmra.mxu0 %v731
    %v809 = vpop.f32.mrf.mxu0
    %v810 = vadd.f32 %v752, %v809
    %811 = vmatmul.f32.gmra.mxu0 %v732
    %v812 = vpop.f32.mrf.mxu0
    %v813 = vadd.f32 %v752, %v812
    %814 = vmatmul.f32.gmra.mxu0 %v733
    %v815 = vpop.f32.mrf.mxu0
    %v816 = vadd.f32 %v752, %v815
    %817 = vdwg.mxu0
    %v818 = vmul.f32 %v771, 0.5
    %v819 = vmul.f32 %v774, 0.5
    %v820 = vmul.f32 %v777, 0.5
    %v821 = vmul.f32 %v780, 0.5
    %v822 = vmul.f32 %v783, 0.5
    %v823 = vmul.f32 %v786, 0.5
    %v824 = vmul.f32 %v789, 0.5
    %v825 = vmul.f32 %v792, 0.5
    %v826 = vmul.f32 %v795, 0.5
    %v827 = vmul.f32 %v798, 0.5
    %v828 = vmul.f32 %v801, 0.5
    %v829 = vmul.f32 %v804, 0.5
    %v830 = vmul.f32 %v807, 0.5
    %v831 = vmul.f32 %v810, 0.5
    %v832 = vmul.f32 %v813, 0.5
    %v833 = vmul.f32 %v816, 0.5
    %v834 = vtanh.pop %v818
    %v835 = vtanh.pop %v819
    %v836 = vtanh.pop %v820
    %v837 = vtanh.pop %v821
    %v838 = vtanh.pop %v822
    %v839 = vtanh.pop %v823
    %v840 = vtanh.pop %v824
    %v841 = vtanh.pop %v825
    %v842 = vtanh.pop %v826
    %v843 = vtanh.pop %v827
    %v844 = vtanh.pop %v828
    %v845 = vtanh.pop %v829
    %v846 = vtanh.pop %v830
    %v847 = vtanh.pop %v831
    %v848 = vtanh.pop %v832
    %v849 = vtanh.pop %v833
    %v850 = vadd.f32 %v834, 1.0
    %v851 = vadd.f32 %v835, 1.0
    %v852 = vadd.f32 %v836, 1.0
    %v853 = vadd.f32 %v837, 1.0
    %v854 = vadd.f32 %v838, 1.0
    %v855 = vadd.f32 %v839, 1.0
    %v856 = vadd.f32 %v840, 1.0
    %v857 = vadd.f32 %v841, 1.0
    %v858 = vadd.f32 %v842, 1.0
    %v859 = vadd.f32 %v843, 1.0
    %v860 = vadd.f32 %v844, 1.0
    %v861 = vadd.f32 %v845, 1.0
    %v862 = vadd.f32 %v846, 1.0
    %v863 = vadd.f32 %v847, 1.0
    %v864 = vadd.f32 %v848, 1.0
    %v865 = vadd.f32 %v849, 1.0
    %v866 = vmul.f32 %v850, 0.5
    %v867 = vmul.f32 %v851, 0.5
    %v868 = vmul.f32 %v852, 0.5
    %v869 = vmul.f32 %v853, 0.5
    %v870 = vmul.f32 %v854, 0.5
    %v871 = vmul.f32 %v855, 0.5
    %v872 = vmul.f32 %v856, 0.5
    %v873 = vmul.f32 %v857, 0.5
    %v874 = vmul.f32 %v858, 0.5
    %v875 = vmul.f32 %v859, 0.5
    %v876 = vmul.f32 %v860, 0.5
    %v877 = vmul.f32 %v861, 0.5
    %v878 = vmul.f32 %v862, 0.5
    %v879 = vmul.f32 %v863, 0.5
    %v880 = vmul.f32 %v864, 0.5
    %v881 = vmul.f32 %v865, 0.5
    %s882 = scalar_lea.vmem [#allocation8], 128
    %883 = vst [vmem:[%s882] sm:$0xff] %v866
    %884 = vst [vmem:[%s882 + $0x8] sm:$0xff] %v867
    %885 = vst [vmem:[%s882 + $0x10] sm:$0xff] %v868
    %886 = vst [vmem:[%s882 + $0x18] sm:$0xff] %v869
    %887 = vst [vmem:[%s882 + $0x20] sm:$0xff] %v870
    %888 = vst [vmem:[%s882 + $0x28] sm:$0xff] %v871
    %889 = vst [vmem:[%s882 + $0x30] sm:$0xff] %v872
    %890 = vst [vmem:[%s882 + $0x38] sm:$0xff] %v873
    %891 = vst [vmem:[%s882 + $0x40] sm:$0xff] %v874
    %892 = vst [vmem:[%s882 + $0x48] sm:$0xff] %v875
    %893 = vst [vmem:[%s882 + $0x50] sm:$0xff] %v876
    %894 = vst [vmem:[%s882 + $0x58] sm:$0xff] %v877
    %895 = vst [vmem:[%s882 + $0x60] sm:$0xff] %v878
    %896 = vst [vmem:[%s882 + $0x68] sm:$0xff] %v879
    %897 = vst [vmem:[%s882 + $0x70] sm:$0xff] %v880
    %898 = vst [vmem:[%s882 + $0x78] sm:$0xff] %v881
    // Predicated region
    $region26: #{ae_forward_padded.1} parent=1 // pred_check
      _
    $region27: #{ae_forward_padded.1} parent=1 // pred_check_branch
      %900 = sbr.rel (0) target = $region29
    $region28: #{ae_forward_padded.1} parent=1 // pred_region
      %902 = vsyncadd [#allocation4], 0
      %s903 = sshll.u32 [#allocation8], 4
      %s904 = int_to_ptr.vmem [resolvable:$true] %s903
      %s905 = sshll.u32 %s3, 4
      %s906 = int_to_ptr.hbm [resolvable:$true] %s905
      %911 = dma.vmem_to_hbm [thread:$0]  %s904, 4096, %s906, [#allocation4], 128, 128, 8
    $region29: #{ae_forward_padded.1} parent=1 // pred_fallthru
      _
    // Predicated region
    $region30: #{ae_forward_padded.1} parent=1 // pred_check
      _
    $region31: #{ae_forward_padded.1} parent=1 // pred_check_branch
      %913 = sbr.rel (0) target = $region33
    $region32: #{ae_forward_padded.1} parent=1 // pred_region
      %915 = dma.done [#allocation4], 4096
    $region33: #{ae_forward_padded.1} parent=1 // pred_fallthru
      _
    %916 = vsyncpa [#allocation3], 1
    %917 = vsyncpa [#allocation6], 1
    %918 = vsyncpa [#allocation4], 1

</llo_original>
